<compile_context>
chip_gen: v7x
topology: tpu7x:2x2x1
jax: 0.10.0
libtpu: 0.0.40
codegen_flags: <defaults>
</compile_context>

<pallas_src>
import jax
import jax.numpy as jnp
from jax.experimental import pallas as pl
from jax.experimental.pallas import tpu as pltpu

# Tile constants for the large-shape path.  1024 / 512 are multiples of 128
# and of every packed-sublane count (8 f32 / 16 bf16 / 32 int8), so both the
# input block (tm, tn) and the transposed output block (tn, tm) are
# layout-legal for all supported dtypes.
_TILE_M = 1024                         # output lane dim -> lane-dense stores
_TILE_N = 512                          # input lane dim -> lane-dense loads
_SMALL_SLAB_BYTES = 256 * 1024         # below this, fold batch elements
_TARGET_STEP_BYTES = 1 * 1024 * 1024   # aim for >= ~1 MiB moved per grid step
_VMEM_LIMIT_BYTES = 32 * 1024 * 1024   # safe ceiling on v5e / v6e / v7x


def _transpose2d_kernel(x_ref, o_ref):
    # x_ref: (tm, tn) VMEM tile ; o_ref: (tn, tm) VMEM tile (batch dim squeezed).
    o_ref[...] = x_ref[...].T


def _transpose_batched_kernel(x_ref, o_ref):
    # x_ref: (bb, M, N) ; o_ref: (bb, N, M)
    o_ref[...] = jnp.transpose(x_ref[...], (0, 2, 1))


def permute_021(x: jax.Array) -> jax.Array:
    """Equivalent of torch.permute(x, (0, 2, 1)) for a rank-3 array."""
    assert x.ndim == 3, "Permute(0,2,1) expects a rank-3 input"
    B, M, N = x.shape
    itemsize = jnp.dtype(x.dtype).itemsize
    slab_bytes = M * N * itemsize

    if slab_bytes <= _SMALL_SLAB_BYTES:
        # --- small-(M,N) path: fold batch elements per grid step ------------
        bb = max(1, min(B, _TARGET_STEP_BYTES // max(1, slab_bytes)))
        return pl.pallas_call(
            _transpose_batched_kernel,
            out_shape=jax.ShapeDtypeStruct((B, N, M), x.dtype),
            grid=(pl.cdiv(B, bb),),
            in_specs=[pl.BlockSpec((bb, M, N), lambda b: (b, 0, 0))],
            out_specs=pl.BlockSpec((bb, N, M), lambda b: (b, 0, 0)),
            compiler_params=pltpu.CompilerParams(
                dimension_semantics=("parallel",),
                vmem_limit_bytes=_VMEM_LIMIT_BYTES,
            ),
        )(x)

    # --- large-(M,N) path: tile the trailing plane ---------------------------
    # Use full extent when it already fits the tile (avoids needless masking);
    # otherwise a 1024 / 512 tile (multiples of (8,128) -> legal + dense).
    tm = M if M <= _TILE_M else _TILE_M
    tn = N if N <= _TILE_N else _TILE_N
    grid = (B, pl.cdiv(M, tm), pl.cdiv(N, tn))
    return pl.pallas_call(
        _transpose2d_kernel,
        out_shape=jax.ShapeDtypeStruct((B, N, M), x.dtype),
        grid=grid,
        # Batch dim squeezed (None) -> kernel sees pure 2-D tiles.
        in_specs=[pl.BlockSpec((None, tm, tn), lambda b, i, j: (b, i, j))],
        out_specs=pl.BlockSpec((None, tn, tm), lambda b, i, j: (b, j, i)),
        compiler_params=pltpu.CompilerParams(
            dimension_semantics=("parallel", "parallel", "parallel"),
            vmem_limit_bytes=_VMEM_LIMIT_BYTES,
        ),
    )(x)


if __name__ == "__main__":
    key = jax.random.PRNGKey(0)

    # 1) Small (batch, seq, hidden)-style shape -> exercises the batch-folded path.
    B, M, N = 2, 8, 32
    x_small = jax.random.normal(key, (B, M, N), dtype=jnp.float32)
    out_small = jax.block_until_ready(permute_021(x_small))
    ref_small = jnp.transpose(x_small, (0, 2, 1))
    assert out_small.shape == (B, N, M), f"bad shape {out_small.shape}"
    assert out_small.dtype == x_small.dtype
    assert jnp.array_equal(out_small, ref_small), "small-path mismatch vs reference"

    # 2) Moderate shape -> exercises the tiled path (incl. a partial edge tile on M).
    B2, M2, N2 = 1, 1280, 384
    x_big = jax.random.normal(jax.random.PRNGKey(1), (B2, M2, N2), dtype=jnp.float32)
    out_big = jax.block_until_ready(permute_021(x_big))
    ref_big = jnp.transpose(x_big, (0, 2, 1))
    assert out_big.shape == (B2, N2, M2), f"bad shape {out_big.shape}"
    assert jnp.array_equal(out_big, ref_big), "tiled-path mismatch vs reference"

    print("KERNEL_OK")
</pallas_src>

<mosaic_0001>
module attributes {stable_mosaic.version = 11 : i64} {
  func.func @_transpose_batched_kernel(%arg0: i32, %arg1: memref<2x8x32xf32, #tpu.memory_space<vmem>>, %arg2: memref<2x32x8xf32, #tpu.memory_space<vmem>>) attributes {dimension_semantics = [#tpu.dimension_semantics<parallel>], iteration_bounds = array<i64: 1>, scalar_prefetch = 0 : i64, scratch_operands = 0 : i64, tpu.core_type = #tpu.core_type<tc>, window_params = [{transform_indices = @transform_0, window_bounds = array<i64: 2, 8, 32>}, {transform_indices = @transform_1, window_bounds = array<i64: 2, 32, 8>}]} {
    %c0 = arith.constant 0 : index
    %c0_0 = arith.constant 0 : index
    %c0_1 = arith.constant 0 : index
    %0 = vector.load %arg1[%c0, %c0_0, %c0_1] : memref<2x8x32xf32, #tpu.memory_space<vmem>>, vector<2x8x32xf32>
    %1 = tpu.transpose %0, [0, 2, 1] : vector<2x8x32xf32> -> vector<2x32x8xf32>
    %c0_2 = arith.constant 0 : index
    %c0_3 = arith.constant 0 : index
    %c0_4 = arith.constant 0 : index
    %2 = vector.load %arg2[%c0_2, %c0_3, %c0_4] : memref<2x32x8xf32, #tpu.memory_space<vmem>>, vector<2x32x8xf32>
    tpu.vector_store %arg2[%c0_2, %c0_3, %c0_4], %1 {strides = array<i32>} : memref<2x32x8xf32, #tpu.memory_space<vmem>>, vector<2x32x8xf32>,
    return
  }
  func.func @transform_0(%arg0: i32) -> (i32, i32, i32) {
    %c0_i32 = arith.constant 0 : i32
    %c0_i32_0 = arith.constant 0 : i32
    %c0_i32_1 = arith.constant 0 : i32
    return %arg0, %c0_i32, %c0_i32_0 : i32, i32, i32
  }
  func.func @transform_1(%arg0: i32) -> (i32, i32, i32) {
    %c0_i32 = arith.constant 0 : i32
    %c0_i32_0 = arith.constant 0 : i32
    %c0_i32_1 = arith.constant 0 : i32
    return %arg0, %c0_i32, %c0_i32_0 : i32, i32, i32
  }
}

</mosaic_0001>

<llo_original>
// kernel: tpu_custom_call.1
$region0: #{tpu_custom_call.1}
  #allocation0 [shape = 'u32[]', space=smem, size = 0x4, offset = 0x4, fixed_abs, tag = 'smem constant byte address 0x4 - core index']
  #allocation1 [shape = 'u32[144,128]{1,0:T(1,128)}', space=vmem, size = 0x12000, scoped, tag = 'internal scratch']
  %s0 = inlined_call_operand.hbm [shape: f32[2,8,32], index: 0, kind: input, shape index: {}]
  %s1 = inlined_call_operand.vmem [shape: f32[2,32,8], index: 1, kind: output, shape index: {}]
  %s2 = sld [smem:[#allocation0]]
  $region18: #{tpu_custom_call.1} parent=0
    _
  %s4 = ssub.s32 1, %s2
  %s5 = scalar_select 0, %s4, %s2
  $region1: #{tpu_custom_call.1} parent=0
    #allocation2 [shape = 'u8[8192]{0}', space=vmem, size = 0x2000, scoped, tag = 'input window, operand 0, single buffered']
    #allocation3 [shape = 's32[1]{0}', space=sflag, size = 0x4, scoped, tag = 'scoped memory for tpu_custom_call.1']
    %6 = vsyncpa [#allocation3], 0
    // Predicated region
    $region2: #{tpu_custom_call.1} parent=1 // pred_check
      _
    $region3: #{tpu_custom_call.1} parent=1 // pred_check_branch
      %8 = sbr.rel (0) target = $region5
    $region4: #{tpu_custom_call.1} parent=1 // pred_region
      %s10 = ssub.s32 256, 256
      %11 = vsyncadd [#allocation3], %s10
      %s12 = sshll.u32 [#allocation2], 4
      %s13 = int_to_ptr.vmem [resolvable:$true] %s12
      %18 = dma.hbm_to_vmem [thread:$0]  %s0, 256, %s13, [#allocation3], 128, 128, 8
    $region5: #{tpu_custom_call.1} parent=1 // pred_fallthru
      _
    // Predicated region
    $region6: #{tpu_custom_call.1} parent=1 // pred_check
      _
    $region7: #{tpu_custom_call.1} parent=1 // pred_check_branch
      %20 = sbr.rel (0) target = $region9
    $region8: #{tpu_custom_call.1} parent=1 // pred_region
      %21 = dma.done [#allocation3], 256
    $region9: #{tpu_custom_call.1} parent=1 // pred_fallthru
      _
    %v22 = vld [vmem:[#allocation2] sm:$0xff]
    %v23 = vld [vmem:[#allocation2 + $0x8] sm:$0xff]
    %24 = vxpose.xlu0.b32.start [1/16] %v22, 128
    %25 = vxpose.xlu0.b32.cont [2/16] 0.0, 128
    %26 = vxpose.xlu0.b32.cont [3/16] 0.0, 128
    %27 = vxpose.xlu0.b32.cont [4/16] 0.0, 128
    %28 = vxpose.xlu0.b32.cont [5/16] 0.0, 128
    %29 = vxpose.xlu0.b32.cont [6/16] 0.0, 128
    %30 = vxpose.xlu0.b32.cont [7/16] 0.0, 128
    %31 = vxpose.xlu0.b32.cont [8/16] 0.0, 128
    %32 = vxpose.xlu0.b32.cont [9/16] 0.0, 128
    %33 = vxpose.xlu0.b32.cont [10/16] 0.0, 128
    %34 = vxpose.xlu0.b32.cont [11/16] 0.0, 128
    %35 = vxpose.xlu0.b32.cont [12/16] 0.0, 128
    %36 = vxpose.xlu0.b32.cont [13/16] 0.0, 128
    %37 = vxpose.xlu0.b32.cont [14/16] 0.0, 128
    %38 = vxpose.xlu0.b32.cont [15/16] 0.0, 128
    %39 = vxpose.xlu0.b32.end [16/16] 0.0, 128
    %v40 = vpop.trf.xlu0
    %v41 = vpop.trf.xlu0
    %v42 = vpop.trf.xlu0
    %v43 = vpop.trf.xlu0
    %v44 = vpop.trf.xlu0
    %v45 = vpop.trf.xlu0
    %v46 = vpop.trf.xlu0
    %v47 = vpop.trf.xlu0
    %v48 = vpop.trf.xlu0
    %v49 = vpop.trf.xlu0
    %v50 = vpop.trf.xlu0
    %v51 = vpop.trf.xlu0
    %v52 = vpop.trf.xlu0
    %v53 = vpop.trf.xlu0
    %v54 = vpop.trf.xlu0
    %v55 = vpop.trf.xlu0
    %56 = vxpose.xlu0.b32.start [1/16] %v23, 128
    %57 = vxpose.xlu0.b32.cont [2/16] 0.0, 128
    %58 = vxpose.xlu0.b32.cont [3/16] 0.0, 128
    %59 = vxpose.xlu0.b32.cont [4/16] 0.0, 128
    %60 = vxpose.xlu0.b32.cont [5/16] 0.0, 128
    %61 = vxpose.xlu0.b32.cont [6/16] 0.0, 128
    %62 = vxpose.xlu0.b32.cont [7/16] 0.0, 128
    %63 = vxpose.xlu0.b32.cont [8/16] 0.0, 128
    %64 = vxpose.xlu0.b32.cont [9/16] 0.0, 128
    %65 = vxpose.xlu0.b32.cont [10/16] 0.0, 128
    %66 = vxpose.xlu0.b32.cont [11/16] 0.0, 128
    %67 = vxpose.xlu0.b32.cont [12/16] 0.0, 128
    %68 = vxpose.xlu0.b32.cont [13/16] 0.0, 128
    %69 = vxpose.xlu0.b32.cont [14/16] 0.0, 128
    %70 = vxpose.xlu0.b32.cont [15/16] 0.0, 128
    %71 = vxpose.xlu0.b32.end [16/16] 0.0, 128
    %v72 = vpop.trf.xlu0
    %v73 = vpop.trf.xlu0
    %v74 = vpop.trf.xlu0
    %v75 = vpop.trf.xlu0
    %v76 = vpop.trf.xlu0
    %v77 = vpop.trf.xlu0
    %v78 = vpop.trf.xlu0
    %v79 = vpop.trf.xlu0
    %v80 = vpop.trf.xlu0
    %v81 = vpop.trf.xlu0
    %v82 = vpop.trf.xlu0
    %v83 = vpop.trf.xlu0
    %v84 = vpop.trf.xlu0
    %v85 = vpop.trf.xlu0
    %v86 = vpop.trf.xlu0
    %v87 = vpop.trf.xlu0
    %vm88 = vcmask 64512
    %89 = vst.msk [vmem:[%s1] sm:$0xff] %vm88, %v40
    %90 = vst.msk [vmem:[%s1 + $0x8] sm:$0xff] %vm88, %v41
    %91 = vst.msk [vmem:[%s1 + $0x10] sm:$0xff] %vm88, %v42
    %92 = vst.msk [vmem:[%s1 + $0x18] sm:$0xff] %vm88, %v43
    %93 = vst.msk [vmem:[%s1 + $0x20] sm:$0xff] %vm88, %v72
    %94 = vst.msk [vmem:[%s1 + $0x28] sm:$0xff] %vm88, %v73
    %95 = vst.msk [vmem:[%s1 + $0x30] sm:$0xff] %vm88, %v74
    %96 = vst.msk [vmem:[%s1 + $0x38] sm:$0xff] %vm88, %v75
    // Predicated region
    $region10: #{tpu_custom_call.1} parent=1 // pred_check
      _
    $region11: #{tpu_custom_call.1} parent=1 // pred_check_branch
      %98 = sbr.rel (0) target = $region13
    $region12: #{tpu_custom_call.1} parent=1 // pred_region
      _
    $region13: #{tpu_custom_call.1} parent=1 // pred_fallthru
      _
    // Predicated region
    $region14: #{tpu_custom_call.1} parent=1 // pred_check
      _
    $region15: #{tpu_custom_call.1} parent=1 // pred_check_branch
      %100 = sbr.rel (0) target = $region17
    $region16: #{tpu_custom_call.1} parent=1 // pred_region
      _
    $region17: #{tpu_custom_call.1} parent=1 // pred_fallthru
      _
    %101 = vsyncpa [#allocation3], 1

</llo_original>
